<compile_context>
chip_gen: v7x
topology: tpu7x:2x2x1
jax: 0.10.0
libtpu: 0.0.40
codegen_flags: <defaults>
</compile_context>

<pallas_src>
import functools
import math

import jax
import jax.numpy as jnp
from jax import lax
from jax.experimental import pallas as pl
from jax.experimental.pallas import tpu as pltpu


def _round_up(a, b):
    return (a + b - 1) // b * b


def _ffn_kernel(x_ref, gamma_ref, beta_ref, w1_ref, b1_ref, w2_ref, b2_ref,
                o_ref, *, eps):
    # ---- LayerNorm over last dim (f32, biased variance — matches nn.LayerNorm) ----
    x = x_ref[...].astype(jnp.float32)                          # (TM, dim)
    mean = jnp.mean(x, axis=-1, keepdims=True)
    xc = x - mean
    var = jnp.mean(xc * xc, axis=-1, keepdims=True)
    # Fold gamma into the rsqrt scale: xn = xc * (rsqrt(var+eps) * gamma) + beta
    scale = lax.rsqrt(var + eps) * gamma_ref[...].astype(jnp.float32)
    xn = xc * scale + beta_ref[...].astype(jnp.float32)

    # ---- Linear(dim -> hidden): bf16 operands, f32 accumulation (full MXU rate) ----
    h = jnp.dot(xn.astype(w1_ref.dtype), w1_ref[...],
                preferred_element_type=jnp.float32)
    h = h + b1_ref[...].astype(jnp.float32)

    # ---- exact GELU (torch.nn.GELU default: 0.5*x*(1+erf(x/sqrt(2)))) ----
    h = 0.5 * h * (1.0 + lax.erf(h * (1.0 / math.sqrt(2.0))))

    # Dropout(p=0.0) is the identity -> no-op.

    # ---- Linear(hidden -> dim): bf16 operands, f32 accumulation ----
    y = jnp.dot(h.astype(w2_ref.dtype), w2_ref[...],
                preferred_element_type=jnp.float32)
    y = y + b2_ref[...].astype(jnp.float32)

    # Dropout(p=0.0) is the identity -> no-op.
    o_ref[...] = y.astype(o_ref.dtype)


def feedforward_pallas(x, params, *, eps=1e-5, tile_m=256,
                       matmul_dtype=jnp.bfloat16):
    """x: (batch, seq, dim) float32. Returns same shape/dtype."""
    gamma, beta, w1, b1, w2, b2 = params
    batch, seq, dim = x.shape
    hidden = w1.shape[1]
    rows = batch * seq

    # Row tile: large enough to feed the MXU, 8-sublane aligned, and no larger
    # than the (8-aligned) row count.  Tail rows are zero-padded and sliced off.
    tile_m = max(8, min(int(tile_m), _round_up(rows, 8)))
    tile_m = _round_up(tile_m, 8)
    rows_p = _round_up(rows, tile_m)

    x2d = x.reshape(rows, dim)
    if rows_p != rows:
        x2d = jnp.pad(x2d, ((0, rows_p - rows), (0, 0)))

    # Broadcastable (1, features) views; LayerNorm/bias params stay f32.
    gamma2 = gamma.reshape(1, dim).astype(jnp.float32)
    beta2 = beta.reshape(1, dim).astype(jnp.float32)
    b1_2 = b1.reshape(1, hidden).astype(jnp.float32)
    b2_2 = b2.reshape(1, dim).astype(jnp.float32)
    # Weights cast to bf16 for full-rate MXU matmuls and half the VMEM.
    w1m = w1.astype(matmul_dtype)
    w2m = w2.astype(matmul_dtype)

    grid = (rows_p // tile_m,)
    kernel = functools.partial(_ffn_kernel, eps=eps)

    # Operands whose block index never changes are kept resident with a single
    # buffer (default double-buffering would duplicate W1/W2 in VMEM).
    resident = dict(pipeline_mode=pl.Buffered(1))

    w_item = jnp.dtype(matmul_dtype).itemsize
    vmem_estimate = (
        2 * tile_m * dim * 4                               # x tiles (double-buffered)
        + 2 * tile_m * dim * 4                             # out tiles (double-buffered)
        + (dim * hidden + hidden * dim) * w_item           # resident weights
        + (3 * dim + hidden) * 4                           # gamma/beta/biases
        + 2 * tile_m * hidden * 4                          # h (f32 + bf16 copy) headroom
        + 3 * tile_m * dim * 4                             # xn / y temporaries headroom
    )
    vmem_limit = int(min(max(2 * vmem_estimate, 32 * 2**20), 64 * 2**20))

    cost = pl.CostEstimate(
        flops=int(2 * rows_p * dim * hidden * 2),          # two matmuls
        transcendentals=int(rows_p * hidden),              # erf in GELU
        bytes_accessed=int(2 * rows_p * dim * 4
                           + 2 * dim * hidden * w_item
                           + (3 * dim + hidden) * 4),
    )

    out2d = pl.pallas_call(
        kernel,
        out_shape=jax.ShapeDtypeStruct((rows_p, dim), x.dtype),
        grid_spec=pltpu.PrefetchScalarGridSpec(
            num_scalar_prefetch=0,
            grid=grid,
            in_specs=[
                pl.BlockSpec((tile_m, dim), lambda i: (i, 0)),              # x rows
                pl.BlockSpec((1, dim), lambda i: (0, 0), **resident),       # gamma
                pl.BlockSpec((1, dim), lambda i: (0, 0), **resident),       # beta
                pl.BlockSpec((dim, hidden), lambda i: (0, 0), **resident),  # W1 (in,out)
                pl.BlockSpec((1, hidden), lambda i: (0, 0), **resident),    # b1
                pl.BlockSpec((hidden, dim), lambda i: (0, 0), **resident),  # W2 (in,out)
                pl.BlockSpec((1, dim), lambda i: (0, 0), **resident),       # b2
            ],
            out_specs=pl.BlockSpec((tile_m, dim), lambda i: (i, 0)),
        ),
        compiler_params=pltpu.CompilerParams(
            dimension_semantics=("parallel",),
            vmem_limit_bytes=vmem_limit),
        cost_estimate=cost,
    )(x2d, gamma2, beta2, w1m, b1_2, w2m, b2_2)

    if rows_p != rows:
        out2d = out2d[:rows]
    return out2d.reshape(batch, seq, dim)
    # TODO(synk): for transformer-scale hidden dims on v7x (64 MiB VMEM), add a
    # hidden-dim grid axis with a VMEM accumulator instead of full-width W1/W2.


def init_params(key, dim, hidden_dim):
    """Deterministic parameter init mirroring the PyTorch module."""
    k1, k2, k3, k4 = jax.random.split(key, 4)
    # LayerNorm: weight=1, bias=0 (PyTorch default).
    gamma = jnp.ones((dim,), jnp.float32)
    beta = jnp.zeros((dim,), jnp.float32)
    # Linear b: dim -> hidden_dim (uniform init, deterministic via PRNGKey).
    bound1 = 1.0 / math.sqrt(dim)
    w1 = jax.random.uniform(k1, (dim, hidden_dim), jnp.float32, -bound1, bound1)
    b1 = jax.random.uniform(k2, (hidden_dim,), jnp.float32, -bound1, bound1)
    # Linear e: hidden_dim -> dim; weight zero-initialized per the module.
    w2 = jnp.zeros((hidden_dim, dim), jnp.float32)
    bound2 = 1.0 / math.sqrt(hidden_dim)
    b2 = jax.random.uniform(k4, (dim,), jnp.float32, -bound2, bound2)
    del k3
    return gamma, beta, w1, b1, w2, b2


def feedforward_ref(x, params, eps=1e-5):
    """Pure-JAX f32 reference for correctness checking."""
    gamma, beta, w1, b1, w2, b2 = params
    mean = jnp.mean(x, axis=-1, keepdims=True)
    var = jnp.mean((x - mean) ** 2, axis=-1, keepdims=True)
    xn = (x - mean) / jnp.sqrt(var + eps) * gamma + beta
    h = xn @ w1 + b1
    h = 0.5 * h * (1.0 + lax.erf(h / math.sqrt(2.0)))
    return h @ w2 + b2


if __name__ == "__main__":
    key = jax.random.PRNGKey(0)
    kx, kp, kw = jax.random.split(key, 3)

    # Small but lane-dense (multiple-of-128) feature dims.
    batch, seq, dim, hidden_dim = 2, 8, 128, 256
    x = jax.random.normal(kx, (batch, seq, dim), jnp.float32)
    params = init_params(kp, dim, hidden_dim)

    # 1) Module-faithful params (second Linear weight zero-initialized).
    out = feedforward_pallas(x, params)
    out = jax.block_until_ready(out)
    ref = feedforward_ref(x, params)
    assert out.shape == x.shape and out.dtype == x.dtype
    assert jnp.allclose(out, ref, atol=1e-4, rtol=1e-4)

    # 2) Sanity check with a non-zero second Linear weight so both bf16
    #    matmuls are exercised (loose tolerance for bf16 operands, f32 accum).
    w2_rand = 0.02 * jax.random.normal(kw, (hidden_dim, dim), jnp.float32)
    params2 = (params[0], params[1], params[2], params[3], w2_rand, params[5])
    out2 = jax.block_until_ready(feedforward_pallas(x, params2))
    ref2 = feedforward_ref(x, params2)
    assert jnp.allclose(out2, ref2, atol=3e-2, rtol=3e-2)

    # 3) Exercise the padded-tail path (rows not a multiple of the tile).
    x_odd = jax.random.normal(kx, (3, 5, dim), jnp.float32)
    out3 = jax.block_until_ready(feedforward_pallas(x_odd, params2))
    ref3 = feedforward_ref(x_odd, params2)
    assert out3.shape == x_odd.shape
    assert jnp.allclose(out3, ref3, atol=3e-2, rtol=3e-2)

    print("KERNEL_OK")
</pallas_src>

<mosaic_0001>
module attributes {stable_mosaic.version = 11 : i64} {
  func.func @_ffn_kernel(%arg0: i32, %arg1: memref<16x128xf32, #tpu.memory_space<vmem>>, %arg2: memref<1x128xf32, #tpu.memory_space<vmem>>, %arg3: memref<1x128xf32, #tpu.memory_space<vmem>>, %arg4: memref<128x256xbf16, #tpu.memory_space<vmem>>, %arg5: memref<1x256xf32, #tpu.memory_space<vmem>>, %arg6: memref<256x128xbf16, #tpu.memory_space<vmem>>, %arg7: memref<1x128xf32, #tpu.memory_space<vmem>>, %arg8: memref<16x128xf32, #tpu.memory_space<vmem>>) attributes {dimension_semantics = [#tpu.dimension_semantics<parallel>], iteration_bounds = array<i64: 1>, scalar_prefetch = 0 : i64, scratch_operands = 0 : i64, tpu.core_type = #tpu.core_type<tc>, window_params = [{transform_indices = @transform_0, window_bounds = array<i64: 16, 128>}, {pipeline_mode = #tpu.pipeline_mode<synchronous>, transform_indices = @transform_1, window_bounds = array<i64: 1, 128>}, {pipeline_mode = #tpu.pipeline_mode<synchronous>, transform_indices = @transform_2, window_bounds = array<i64: 1, 128>}, {pipeline_mode = #tpu.pipeline_mode<synchronous>, transform_indices = @transform_3, window_bounds = array<i64: 128, 256>}, {pipeline_mode = #tpu.pipeline_mode<synchronous>, transform_indices = @transform_4, window_bounds = array<i64: 1, 256>}, {pipeline_mode = #tpu.pipeline_mode<synchronous>, transform_indices = @transform_5, window_bounds = array<i64: 256, 128>}, {pipeline_mode = #tpu.pipeline_mode<synchronous>, transform_indices = @transform_6, window_bounds = array<i64: 1, 128>}, {transform_indices = @transform_7, window_bounds = array<i64: 16, 128>}]} {
    %c0 = arith.constant 0 : index
    %c0_0 = arith.constant 0 : index
    %0 = vector.load %arg1[%c0, %c0_0] : memref<16x128xf32, #tpu.memory_space<vmem>>, vector<16x128xf32>
    %cst = arith.constant dense<0.000000e+00> : vector<16xf32>
    %1 = vector.multi_reduction <add>, %0, %cst [1] : vector<16x128xf32> to vector<16xf32>
    %2 = vector.shape_cast %1 : vector<16xf32> to vector<16x1xf32>
    %cst_1 = arith.constant 1.280000e+02 : f32
    %3 = vector.broadcast %cst_1 : f32 to vector<16x1xf32>
    %4 = arith.divf %2, %3 : vector<16x1xf32>
    %5 = vector.broadcast %4 : vector<16x1xf32> to vector<16x128xf32>
    %6 = arith.subf %0, %5 : vector<16x128xf32>
    %7 = arith.mulf %6, %6 : vector<16x128xf32>
    %cst_2 = arith.constant dense<0.000000e+00> : vector<16xf32>
    %8 = vector.multi_reduction <add>, %7, %cst_2 [1] : vector<16x128xf32> to vector<16xf32>
    %9 = vector.shape_cast %8 : vector<16xf32> to vector<16x1xf32>
    %cst_3 = arith.constant 1.280000e+02 : f32
    %10 = vector.broadcast %cst_3 : f32 to vector<16x1xf32>
    %11 = arith.divf %9, %10 : vector<16x1xf32>
    %cst_4 = arith.constant 9.99999974E-6 : f32
    %12 = vector.broadcast %cst_4 : f32 to vector<16x1xf32>
    %13 = arith.addf %11, %12 : vector<16x1xf32>
    %14 = math.rsqrt %13 : vector<16x1xf32>
    %c0_5 = arith.constant 0 : index
    %c0_6 = arith.constant 0 : index
    %15 = vector.load %arg2[%c0_5, %c0_6] : memref<1x128xf32, #tpu.memory_space<vmem>>, vector<1x128xf32>
    %16 = vector.broadcast %14 : vector<16x1xf32> to vector<16x128xf32>
    %17 = vector.broadcast %15 : vector<1x128xf32> to vector<16x128xf32>
    %18 = arith.mulf %16, %17 : vector<16x128xf32>
    %19 = arith.mulf %6, %18 : vector<16x128xf32>
    %c0_7 = arith.constant 0 : index
    %c0_8 = arith.constant 0 : index
    %20 = vector.load %arg3[%c0_7, %c0_8] : memref<1x128xf32, #tpu.memory_space<vmem>>, vector<1x128xf32>
    %21 = vector.broadcast %20 : vector<1x128xf32> to vector<16x128xf32>
    %22 = arith.addf %19, %21 : vector<16x128xf32>
    %23 = arith.truncf %22 : vector<16x128xf32> to vector<16x128xbf16>
    %c0_9 = arith.constant 0 : index
    %c0_10 = arith.constant 0 : index
    %24 = vector.load %arg4[%c0_9, %c0_10] : memref<128x256xbf16, #tpu.memory_space<vmem>>, vector<128x256xbf16>
    %cst_11 = arith.constant dense<0.000000e+00> : vector<16x256xf32>
    %25 = tpu.matmul %23, %24, %cst_11 {dimension_numbers = #tpu.dot_dimension_numbers<[1], [0], [0], [1], [0, 0, 1, 1], [], []>} : vector<16x128xbf16>, vector<128x256xbf16>, vector<16x256xf32> -> vector<16x256xf32>
    %c0_12 = arith.constant 0 : index
    %c0_13 = arith.constant 0 : index
    %26 = vector.load %arg5[%c0_12, %c0_13] : memref<1x256xf32, #tpu.memory_space<vmem>>, vector<1x256xf32>
    %27 = vector.broadcast %26 : vector<1x256xf32> to vector<16x256xf32>
    %28 = arith.addf %25, %27 : vector<16x256xf32>
    %cst_14 = arith.constant 5.000000e-01 : f32
    %29 = vector.broadcast %cst_14 : f32 to vector<16x256xf32>
    %30 = arith.mulf %29, %28 : vector<16x256xf32>
    %cst_15 = arith.constant 0.707106769 : f32
    %31 = vector.broadcast %cst_15 : f32 to vector<16x256xf32>
    %32 = arith.mulf %28, %31 : vector<16x256xf32>
    %33 = math.erf %32 : vector<16x256xf32>
    %cst_16 = arith.constant 1.000000e+00 : f32
    %34 = vector.broadcast %cst_16 : f32 to vector<16x256xf32>
    %35 = arith.addf %34, %33 : vector<16x256xf32>
    %36 = arith.mulf %30, %35 : vector<16x256xf32>
    %37 = arith.truncf %36 : vector<16x256xf32> to vector<16x256xbf16>
    %c0_17 = arith.constant 0 : index
    %c0_18 = arith.constant 0 : index
    %38 = vector.load %arg6[%c0_17, %c0_18] : memref<256x128xbf16, #tpu.memory_space<vmem>>, vector<256x128xbf16>
    %cst_19 = arith.constant dense<0.000000e+00> : vector<16x128xf32>
    %39 = tpu.matmul %37, %38, %cst_19 {dimension_numbers = #tpu.dot_dimension_numbers<[1], [0], [0], [1], [0, 0, 1, 1], [], []>} : vector<16x256xbf16>, vector<256x128xbf16>, vector<16x128xf32> -> vector<16x128xf32>
    %c0_20 = arith.constant 0 : index
    %c0_21 = arith.constant 0 : index
    %40 = vector.load %arg7[%c0_20, %c0_21] : memref<1x128xf32, #tpu.memory_space<vmem>>, vector<1x128xf32>
    %41 = vector.broadcast %40 : vector<1x128xf32> to vector<16x128xf32>
    %42 = arith.addf %39, %41 : vector<16x128xf32>
    %c0_22 = arith.constant 0 : index
    %c0_23 = arith.constant 0 : index
    %43 = vector.load %arg8[%c0_22, %c0_23] : memref<16x128xf32, #tpu.memory_space<vmem>>, vector<16x128xf32>
    tpu.vector_store %arg8[%c0_22, %c0_23], %42 {strides = array<i32>} : memref<16x128xf32, #tpu.memory_space<vmem>>, vector<16x128xf32>,
    return
  }
  func.func @transform_0(%arg0: i32) -> (i32, i32) {
    %c0_i32 = arith.constant 0 : i32
    %c0_i32_0 = arith.constant 0 : i32
    return %arg0, %c0_i32 : i32, i32
  }
  func.func @transform_1(%arg0: i32) -> (i32, i32) {
    %c0_i32 = arith.constant 0 : i32
    %c0_i32_0 = arith.constant 0 : i32
    %c0_i32_1 = arith.constant 0 : i32
    return %c0_i32, %c0_i32_0 : i32, i32
  }
  func.func @transform_2(%arg0: i32) -> (i32, i32) {
    %c0_i32 = arith.constant 0 : i32
    %c0_i32_0 = arith.constant 0 : i32
    %c0_i32_1 = arith.constant 0 : i32
    return %c0_i32, %c0_i32_0 : i32, i32
  }
  func.func @transform_3(%arg0: i32) -> (i32, i32) {
    %c0_i32 = arith.constant 0 : i32
    %c0_i32_0 = arith.constant 0 : i32
    %c0_i32_1 = arith.constant 0 : i32
    return %c0_i32, %c0_i32_0 : i32, i32
  }
  func.func @transform_4(%arg0: i32) -> (i32, i32) {
    %c0_i32 = arith.constant 0 : i32
    %c0_i32_0 = arith.constant 0 : i32
    %c0_i32_1 = arith.constant 0 : i32
    return %c0_i32, %c0_i32_0 : i32, i32
  }
  func.func @transform_5(%arg0: i32) -> (i32, i32) {
    %c0_i32 = arith.constant 0 : i32
    %c0_i32_0 = arith.constant 0 : i32
    %c0_i32_1 = arith.constant 0 : i32
    return %c0_i32, %c0_i32_0 : i32, i32
  }
  func.func @transform_6(%arg0: i32) -> (i32, i32) {
    %c0_i32 = arith.constant 0 : i32
    %c0_i32_0 = arith.constant 0 : i32
    %c0_i32_1 = arith.constant 0 : i32
    return %c0_i32, %c0_i32_0 : i32, i32
  }
  func.func @transform_7(%arg0: i32) -> (i32, i32) {
    %c0_i32 = arith.constant 0 : i32
    %c0_i32_0 = arith.constant 0 : i32
    return %arg0, %c0_i32 : i32, i32
  }
}

</mosaic_0001>

<llo_original>
// kernel: tpu_custom_call.1
$region0: #{tpu_custom_call.1}
  #allocation0 [shape = 'u32[]', space=smem, size = 0x4, offset = 0x4, fixed_abs, tag = 'smem constant byte address 0x4 - core index']
  #allocation1 [shape = 'u32[144,128]{1,0:T(1,128)}', space=vmem, size = 0x12000, scoped, tag = 'internal scratch']
  %s0 = inlined_call_operand.hbm [shape: f32[16,128], index: 0, kind: input, shape index: {}]
  %s1 = inlined_call_operand.vmem [shape: f32[1,128], index: 1, kind: input, shape index: {}]
  %s2 = inlined_call_operand.vmem [shape: f32[1,128], index: 2, kind: input, shape index: {}]
  %s3 = inlined_call_operand.hbm [shape: bf16[128,256], index: 3, kind: input, shape index: {}]
  %s4 = inlined_call_operand.vmem [shape: f32[1,256], index: 4, kind: input, shape index: {}]
  %s5 = inlined_call_operand.hbm [shape: bf16[256,128], index: 5, kind: input, shape index: {}]
  %s6 = inlined_call_operand.vmem [shape: f32[1,128], index: 6, kind: input, shape index: {}]
  %s7 = inlined_call_operand.hbm [shape: f32[16,128], index: 7, kind: output, shape index: {}]
  %s8 = sld [smem:[#allocation0]]
  $region50: #{tpu_custom_call.1} parent=0
    _
  %s10 = ssub.s32 1, %s8
  %s11 = scalar_select 0, %s10, %s8
  $region1: #{tpu_custom_call.1} parent=0
    #allocation2 [shape = 'u8[8192]{0}', space=vmem, size = 0x2000, scoped, tag = 'input window, operand 0, single buffered']
    #allocation3 [shape = 's32[1]{0}', space=sflag, size = 0x4, scoped, tag = 'scoped memory for tpu_custom_call.1']
    #allocation4 [shape = 's32[1]{0}', space=sflag, size = 0x4, scoped, tag = 'scoped memory for tpu_custom_call.1']
    #allocation5 [shape = 'u8[65536]{0}', space=vmem, size = 0x10000, scoped, tag = 'input window, operand 3, single buffered']
    #allocation6 [shape = 's32[1]{0}', space=sflag, size = 0x4, scoped, tag = 'scoped memory for tpu_custom_call.1']
    #allocation7 [shape = 'u8[65536]{0}', space=vmem, size = 0x10000, scoped, tag = 'input window, operand 5, single buffered']
    #allocation8 [shape = 'u8[8192]{0}', space=vmem, size = 0x2000, scoped, tag = 'output window, operand 0, single buffered']
    %12 = vsyncpa [#allocation3], 0
    %13 = vsyncpa [#allocation6], 0
    %14 = vsyncpa [#allocation4], 0
    // Predicated region
    $region2: #{tpu_custom_call.1} parent=1 // pred_check
      _
    $region3: #{tpu_custom_call.1} parent=1 // pred_check_branch
      %16 = sbr.rel (0) target = $region5
    $region4: #{tpu_custom_call.1} parent=1 // pred_region
      %s18 = ssub.s32 256, 256
      %19 = vsyncadd [#allocation3], %s18
      %s20 = sshll.u32 [#allocation2], 4
      %s21 = int_to_ptr.vmem [resolvable:$true] %s20
      %26 = dma.hbm_to_vmem [thread:$0]  %s0, 256, %s21, [#allocation3], 128, 128, 8
    $region5: #{tpu_custom_call.1} parent=1 // pred_fallthru
      _
    // Predicated region
    $region6: #{tpu_custom_call.1} parent=1 // pred_check
      _
    $region7: #{tpu_custom_call.1} parent=1 // pred_check_branch
      %28 = sbr.rel (0) target = $region9
    $region8: #{tpu_custom_call.1} parent=1 // pred_region
      _
    $region9: #{tpu_custom_call.1} parent=1 // pred_fallthru
      _
    // Predicated region
    $region10: #{tpu_custom_call.1} parent=1 // pred_check
      _
    $region11: #{tpu_custom_call.1} parent=1 // pred_check_branch
      %30 = sbr.rel (0) target = $region13
    $region12: #{tpu_custom_call.1} parent=1 // pred_region
      _
    $region13: #{tpu_custom_call.1} parent=1 // pred_fallthru
      _
    // Predicated region
    $region14: #{tpu_custom_call.1} parent=1 // pred_check
      _
    $region15: #{tpu_custom_call.1} parent=1 // pred_check_branch
      %32 = sbr.rel (0) target = $region17
    $region16: #{tpu_custom_call.1} parent=1 // pred_region
      %s34 = ssub.s32 2048, 2048
      %35 = vsyncadd [#allocation6], %s34
      %s36 = sshll.u32 [#allocation5], 4
      %s37 = int_to_ptr.vmem [resolvable:$true] %s36
      %42 = dma.hbm_to_vmem [thread:$0]  %s3, 2048, %s37, [#allocation6], 128, 128, 8
    $region17: #{tpu_custom_call.1} parent=1 // pred_fallthru
      _
    // Predicated region
    $region18: #{tpu_custom_call.1} parent=1 // pred_check
      _
    $region19: #{tpu_custom_call.1} parent=1 // pred_check_branch
      %44 = sbr.rel (0) target = $region21
    $region20: #{tpu_custom_call.1} parent=1 // pred_region
      _
    $region21: #{tpu_custom_call.1} parent=1 // pred_fallthru
      _
    // Predicated region
    $region22: #{tpu_custom_call.1} parent=1 // pred_check
      _
    $region23: #{tpu_custom_call.1} parent=1 // pred_check_branch
      %46 = sbr.rel (0) target = $region25
    $region24: #{tpu_custom_call.1} parent=1 // pred_region
      %s48 = ssub.s32 2048, 2048
      %49 = vsyncadd [#allocation6], %s48
      %s50 = sshll.u32 [#allocation7], 4
      %s51 = int_to_ptr.vmem [resolvable:$true] %s50
      %56 = dma.hbm_to_vmem [thread:$0]  %s5, 2048, %s51, [#allocation6], 64, 64, 4
    $region25: #{tpu_custom_call.1} parent=1 // pred_fallthru
      _
    // Predicated region
    $region26: #{tpu_custom_call.1} parent=1 // pred_check
      _
    $region27: #{tpu_custom_call.1} parent=1 // pred_check_branch
      %58 = sbr.rel (0) target = $region29
    $region28: #{tpu_custom_call.1} parent=1 // pred_region
      _
    $region29: #{tpu_custom_call.1} parent=1 // pred_fallthru
      _
    // Predicated region
    $region30: #{tpu_custom_call.1} parent=1 // pred_check
      _
    $region31: #{tpu_custom_call.1} parent=1 // pred_check_branch
      %60 = sbr.rel (0) target = $region33
    $region32: #{tpu_custom_call.1} parent=1 // pred_region
      %61 = dma.done [#allocation3], 256
    $region33: #{tpu_custom_call.1} parent=1 // pred_fallthru
      _
    // Predicated region
    $region34: #{tpu_custom_call.1} parent=1 // pred_check
      _
    $region35: #{tpu_custom_call.1} parent=1 // pred_check_branch
      %63 = sbr.rel (0) target = $region37
    $region36: #{tpu_custom_call.1} parent=1 // pred_region
      %64 = dma.done [#allocation6], 2048
    $region37: #{tpu_custom_call.1} parent=1 // pred_fallthru
      _
    // Predicated region
    $region38: #{tpu_custom_call.1} parent=1 // pred_check
      _
    $region39: #{tpu_custom_call.1} parent=1 // pred_check_branch
      %66 = sbr.rel (0) target = $region41
    $region40: #{tpu_custom_call.1} parent=1 // pred_region
      %67 = dma.done [#allocation6], 2048
    $region41: #{tpu_custom_call.1} parent=1 // pred_fallthru
      _
    %v69 = vld [vmem:[#allocation2] sm:$0xff]
    %v70 = vld [vmem:[#allocation2 + $0x8] sm:$0xff]
    %71 = vadd.xlane.f32.xlu0 %v69
    %v72 = vpop.xlane.xlu0 %71
    %73 = vadd.xlane.f32.xlu0 %v70
    %v74 = vpop.xlane.xlu0 %73
    %v75 = vrcp.pop 128.0
    %v76 = vmul.f32 %v72, %v75
    %v77 = vmul.f32 %v74, %v75
    %v78 = vsub.f32 %v69, %v76
    %v79 = vsub.f32 %v70, %v77
    %v80 = vmul.f32 %v78, %v78
    %v81 = vmul.f32 %v79, %v79
    %82 = vadd.xlane.f32.xlu0 %v80
    %v83 = vpop.xlane.xlu0 %82
    %84 = vadd.xlane.f32.xlu0 %v81
    %v85 = vpop.xlane.xlu0 %84
    %v86 = vmul.f32 %v83, %v75
    %v87 = vmul.f32 %v85, %v75
    %v88 = vadd.f32 %v86, 1e-05
    %v89 = vadd.f32 %v87, 1e-05
    %v90 = vrsqrt.pop %v88
    %v91 = vrsqrt.pop %v89
    %v92 = vld [vmem:[%s1] sm:$0x1]
    %v94 = vlaneseq
    %v95 = vshrl.u32 %v94, 7
    %v96 = vsub.s32 0, %v95
    %v97 = vrot.slane %v92, %v96
    %v99 = vmul.f32 %v90, %v97
    %v100 = vmul.f32 %v91, %v97
    %v101 = vmul.f32 %v78, %v99
    %v102 = vmul.f32 %v79, %v100
    %v103 = vld [vmem:[%s2] sm:$0x1]
    %v105 = vlaneseq
    %v106 = vshrl.u32 %v105, 7
    %v107 = vsub.s32 0, %v106
    %v108 = vrot.slane %v103, %v107
    %v110 = vadd.f32 %v101, %v108
    %v111 = vadd.f32 %v102, %v108
    %v112 = vpack.c.bf16 %v111, %v110
    %v113 = vld [vmem:[#allocation5] sm:$0xff]
    %v114 = vld [vmem:[#allocation5 + $0x8] sm:$0xff]
    %v115 = vld [vmem:[#allocation5 + $0x10] sm:$0xff]
    %v116 = vld [vmem:[#allocation5 + $0x18] sm:$0xff]
    %v117 = vld [vmem:[#allocation5 + $0x20] sm:$0xff]
    %v118 = vld [vmem:[#allocation5 + $0x28] sm:$0xff]
    %v119 = vld [vmem:[#allocation5 + $0x30] sm:$0xff]
    %v120 = vld [vmem:[#allocation5 + $0x38] sm:$0xff]
    %v121 = vld [vmem:[#allocation5 + $0x40] sm:$0xff]
    %v122 = vld [vmem:[#allocation5 + $0x48] sm:$0xff]
    %v123 = vld [vmem:[#allocation5 + $0x50] sm:$0xff]
    %v124 = vld [vmem:[#allocation5 + $0x58] sm:$0xff]
    %v125 = vld [vmem:[#allocation5 + $0x60] sm:$0xff]
    %v126 = vld [vmem:[#allocation5 + $0x68] sm:$0xff]
    %v127 = vld [vmem:[#allocation5 + $0x70] sm:$0xff]
    %v128 = vld [vmem:[#allocation5 + $0x78] sm:$0xff]
    %v129 = vld [vmem:[%s4] sm:$0x3]
    %v131 = vlaneseq
    %v132 = vshrl.u32 %v131, 7
    %v133 = vsub.s32 0, %v132
    %v134 = vrot.slane %v129, %v133
    %v135 = vlaneseq
    %v136 = vshrl.u32 %v135, 7
    %v137 = vsub.s32 1, %v136
    %v138 = vrot.slane %v129, %v137
    %v157 = vunpack.c.l.b16 %v113
    %v158 = vunpack.c.h.b16 %v113
    %v159 = vunpack.c.l.b16 %v114
    %v160 = vunpack.c.h.b16 %v114
    %v161 = vunpack.c.l.b16 %v115
    %v162 = vunpack.c.h.b16 %v115
    %v163 = vunpack.c.l.b16 %v116
    %v164 = vunpack.c.h.b16 %v116
    %v165 = vunpack.c.l.b16 %v117
    %v166 = vunpack.c.h.b16 %v117
    %v167 = vunpack.c.l.b16 %v118
    %v168 = vunpack.c.h.b16 %v118
    %v169 = vunpack.c.l.b16 %v119
    %v170 = vunpack.c.h.b16 %v119
    %v171 = vunpack.c.l.b16 %v120
    %v172 = vunpack.c.h.b16 %v120
    %v173 = vunpack.c.l.b16 %v121
    %v174 = vunpack.c.h.b16 %v121
    %v175 = vunpack.c.l.b16 %v122
    %v176 = vunpack.c.h.b16 %v122
    %v177 = vunpack.c.l.b16 %v123
    %v178 = vunpack.c.h.b16 %v123
    %v179 = vunpack.c.l.b16 %v124
    %v180 = vunpack.c.h.b16 %v124
    %v181 = vunpack.c.l.b16 %v125
    %v182 = vunpack.c.h.b16 %v125
    %v183 = vunpack.c.l.b16 %v126
    %v184 = vunpack.c.h.b16 %v126
    %v185 = vunpack.c.l.b16 %v127
    %v186 = vunpack.c.h.b16 %v127
    %v187 = vunpack.c.l.b16 %v128
    %v188 = vunpack.c.h.b16 %v128
    %v189 = vpack.c.b16 %v159, %v157
    %v190 = vpack.c.b16 %v160, %v158
    %v191 = vpack.c.b16 %v163, %v161
    %v192 = vpack.c.b16 %v164, %v162
    %v193 = vpack.c.b16 %v167, %v165
    %v194 = vpack.c.b16 %v168, %v166
    %v195 = vpack.c.b16 %v171, %v169
    %v196 = vpack.c.b16 %v172, %v170
    %v197 = vpack.c.b16 %v175, %v173
    %v198 = vpack.c.b16 %v176, %v174
    %v199 = vpack.c.b16 %v179, %v177
    %v200 = vpack.c.b16 %v180, %v178
    %v201 = vpack.c.b16 %v183, %v181
    %v202 = vpack.c.b16 %v184, %v182
    %v203 = vpack.c.b16 %v187, %v185
    %v204 = vpack.c.b16 %v188, %v186
    %221 = vmatprep.subr.bf16.mxu0 %v190
    %222 = vmatpush1.bf16.msra.mxu0 %v189
    %223 = vmatprep.subr.bf16.mxu0 %v192
    %224 = vmatpush1.bf16.msra.mxu0 %v191
    %225 = vmatprep.subr.bf16.mxu0 %v194
    %226 = vmatpush1.bf16.msra.mxu0 %v193
    %227 = vmatprep.subr.bf16.mxu0 %v196
    %228 = vmatpush1.bf16.msra.mxu0 %v195
    %229 = vmatprep.subr.bf16.mxu0 %v198
    %230 = vmatpush1.bf16.msra.mxu0 %v197
    %231 = vmatprep.subr.bf16.mxu0 %v200
    %232 = vmatpush1.bf16.msra.mxu0 %v199
    %233 = vmatprep.subr.bf16.mxu0 %v202
    %234 = vmatpush1.bf16.msra.mxu0 %v201
    %235 = vmatprep.subr.bf16.mxu0 %v204
    %236 = vmatpush1.bf16.msra.mxu0 %v203
    %237 = vmatprep.subr.bf16.mxu0 0
    %238 = vmatpush1.bf16.msra.mxu0 0
    %239 = vmatprep.subr.bf16.mxu0 0
    %240 = vmatpush1.bf16.msra.mxu0 0
    %241 = vmatprep.subr.bf16.mxu0 0
    %242 = vmatpush1.bf16.msra.mxu0 0
    %243 = vmatprep.subr.bf16.mxu0 0
    %244 = vmatpush1.bf16.msra.mxu0 0
    %245 = vmatprep.subr.bf16.mxu0 0
    %246 = vmatpush1.bf16.msra.mxu0 0
    %247 = vmatprep.subr.bf16.mxu0 0
    %248 = vmatpush1.bf16.msra.mxu0 0
    %249 = vmatprep.subr.bf16.mxu0 0
    %250 = vmatpush1.bf16.msra.mxu0 0
    %251 = vmatprep.subr.bf16.mxu0 0
    %252 = vmatpush1.bf16.msra.mxu0 0
    %253 = vmatprep.mubr.bf16.mxu0 0
    %254 = vmatmul.mubr.bf16.gmra.mrb[0].mxu0 %v112
    %v255 = vpop.f32.mrb[0].mxu0
    %v256 = vadd.f32 %v134, %v255
    %v257 = vpop.f32.mrb[0].mxu0
    %v258 = vadd.f32 %v138, %v257
    %v259 = vpop.f32.mrb[0].mxu0
    %v260 = vadd.f32 %v134, %v259
    %v261 = vpop.f32.mrb[0].mxu0
    %v262 = vadd.f32 %v138, %v261
    %263 = vdwg.mxu0
    %v264 = vmul.f32 %v256, 0.5
    %v265 = vmul.f32 %v258, 0.5
    %v266 = vmul.f32 %v260, 0.5
    %v267 = vmul.f32 %v262, 0.5
    %v268 = vmul.f32 %v256, 0.70710677
    %v269 = vmul.f32 %v258, 0.70710677
    %v270 = vmul.f32 %v260, 0.70710677
    %v271 = vmul.f32 %v262, 0.70710677
    %v272 = verf.f32.pop %v268
    %v273 = verf.f32.pop %v269
    %v274 = verf.f32.pop %v270
    %v275 = verf.f32.pop %v271
    %v276 = vadd.f32 %v272, 1.0
    %v277 = vadd.f32 %v273, 1.0
    %v278 = vadd.f32 %v274, 1.0
    %v279 = vadd.f32 %v275, 1.0
    %v280 = vmul.f32 %v264, %v276
    %v281 = vmul.f32 %v265, %v277
    %v282 = vmul.f32 %v266, %v278
    %v283 = vmul.f32 %v267, %v279
    %v284 = vpack.c.bf16 %v282, %v280
    %v285 = vpack.c.bf16 %v283, %v281
    %v286 = vld [vmem:[#allocation7] sm:$0xf]
    %v287 = vld [vmem:[#allocation7 + $0x4] sm:$0xf]
    %v288 = vld [vmem:[#allocation7 + $0x8] sm:$0xf]
    %v289 = vld [vmem:[#allocation7 + $0xc] sm:$0xf]
    %v290 = vld [vmem:[#allocation7 + $0x10] sm:$0xf]
    %v291 = vld [vmem:[#allocation7 + $0x14] sm:$0xf]
    %v292 = vld [vmem:[#allocation7 + $0x18] sm:$0xf]
    %v293 = vld [vmem:[#allocation7 + $0x1c] sm:$0xf]
    %v294 = vld [vmem:[#allocation7 + $0x20] sm:$0xf]
    %v295 = vld [vmem:[#allocation7 + $0x24] sm:$0xf]
    %v296 = vld [vmem:[#allocation7 + $0x28] sm:$0xf]
    %v297 = vld [vmem:[#allocation7 + $0x2c] sm:$0xf]
    %v298 = vld [vmem:[#allocation7 + $0x30] sm:$0xf]
    %v299 = vld [vmem:[#allocation7 + $0x34] sm:$0xf]
    %v300 = vld [vmem:[#allocation7 + $0x38] sm:$0xf]
    %v301 = vld [vmem:[#allocation7 + $0x3c] sm:$0xf]
    %v302 = vld [vmem:[#allocation7 + $0x40] sm:$0xf]
    %v303 = vld [vmem:[#allocation7 + $0x44] sm:$0xf]
    %v304 = vld [vmem:[#allocation7 + $0x48] sm:$0xf]
    %v305 = vld [vmem:[#allocation7 + $0x4c] sm:$0xf]
    %v306 = vld [vmem:[#allocation7 + $0x50] sm:$0xf]
    %v307 = vld [vmem:[#allocation7 + $0x54] sm:$0xf]
    %v308 = vld [vmem:[#allocation7 + $0x58] sm:$0xf]
    %v309 = vld [vmem:[#allocation7 + $0x5c] sm:$0xf]
    %v310 = vld [vmem:[#allocation7 + $0x60] sm:$0xf]
    %v311 = vld [vmem:[#allocation7 + $0x64] sm:$0xf]
    %v312 = vld [vmem:[#allocation7 + $0x68] sm:$0xf]
    %v313 = vld [vmem:[#allocation7 + $0x6c] sm:$0xf]
    %v314 = vld [vmem:[#allocation7 + $0x70] sm:$0xf]
    %v315 = vld [vmem:[#allocation7 + $0x74] sm:$0xf]
    %v316 = vld [vmem:[#allocation7 + $0x78] sm:$0xf]
    %v317 = vld [vmem:[#allocation7 + $0x7c] sm:$0xf]
    %v318 = vld [vmem:[%s6] sm:$0x1]
    %v320 = vlaneseq
    %v321 = vshrl.u32 %v320, 7
    %v322 = vsub.s32 0, %v321
    %v323 = vrot.slane %v318, %v322
    %v357 = vunpack.c.l.b16 %v286
    %v358 = vunpack.c.l.b16 %v287
    %v359 = vunpack.c.l.b16 %v288
    %v360 = vunpack.c.l.b16 %v289
    %v361 = vunpack.c.l.b16 %v290
    %v362 = vunpack.c.l.b16 %v291
    %v363 = vunpack.c.l.b16 %v292
    %v364 = vunpack.c.l.b16 %v293
    %v365 = vunpack.c.l.b16 %v294
    %v366 = vunpack.c.l.b16 %v295
    %v367 = vunpack.c.l.b16 %v296
    %v368 = vunpack.c.l.b16 %v297
    %v369 = vunpack.c.l.b16 %v298
    %v370 = vunpack.c.l.b16 %v299
    %v371 = vunpack.c.l.b16 %v300
    %v372 = vunpack.c.l.b16 %v301
    %v373 = vunpack.c.l.b16 %v302
    %v374 = vunpack.c.l.b16 %v303
    %v375 = vunpack.c.l.b16 %v304
    %v376 = vunpack.c.l.b16 %v305
    %v377 = vunpack.c.l.b16 %v306
    %v378 = vunpack.c.l.b16 %v307
    %v379 = vunpack.c.l.b16 %v308
    %v380 = vunpack.c.l.b16 %v309
    %v381 = vunpack.c.l.b16 %v310
    %v382 = vunpack.c.l.b16 %v311
    %v383 = vunpack.c.l.b16 %v312
    %v384 = vunpack.c.l.b16 %v313
    %v385 = vunpack.c.l.b16 %v314
    %v386 = vunpack.c.l.b16 %v315
    %v387 = vunpack.c.l.b16 %v316
    %v388 = vunpack.c.l.b16 %v317
    %v389 = vpack.c.b16 %v358, %v357
    %v390 = vpack.c.b16 %v360, %v359
    %v391 = vpack.c.b16 %v362, %v361
    %v392 = vpack.c.b16 %v364, %v363
    %v393 = vpack.c.b16 %v366, %v365
    %v394 = vpack.c.b16 %v368, %v367
    %v395 = vpack.c.b16 %v370, %v369
    %v396 = vpack.c.b16 %v372, %v371
    %v397 = vpack.c.b16 %v374, %v373
    %v398 = vpack.c.b16 %v376, %v375
    %v399 = vpack.c.b16 %v378, %v377
    %v400 = vpack.c.b16 %v380, %v379
    %v401 = vpack.c.b16 %v382, %v381
    %v402 = vpack.c.b16 %v384, %v383
    %v403 = vpack.c.b16 %v386, %v385
    %v404 = vpack.c.b16 %v388, %v387
    %421 = vmatprep.subr.bf16.mxu0 0
    %422 = vmatpush1.bf16.msra.mxu0 %v389
    %423 = vmatprep.subr.bf16.mxu0 0
    %424 = vmatpush1.bf16.msra.mxu0 %v390
    %425 = vmatprep.subr.bf16.mxu0 0
    %426 = vmatpush1.bf16.msra.mxu0 %v391
    %427 = vmatprep.subr.bf16.mxu0 0
    %428 = vmatpush1.bf16.msra.mxu0 %v392
    %429 = vmatprep.subr.bf16.mxu0 0
    %430 = vmatpush1.bf16.msra.mxu0 %v393
    %431 = vmatprep.subr.bf16.mxu0 0
    %432 = vmatpush1.bf16.msra.mxu0 %v394
    %433 = vmatprep.subr.bf16.mxu0 0
    %434 = vmatpush1.bf16.msra.mxu0 %v395
    %435 = vmatprep.subr.bf16.mxu0 0
    %436 = vmatpush1.bf16.msra.mxu0 %v396
    %437 = vmatprep.subr.bf16.mxu0 0
    %438 = vmatpush1.bf16.msra.mxu0 %v397
    %439 = vmatprep.subr.bf16.mxu0 0
    %440 = vmatpush1.bf16.msra.mxu0 %v398
    %441 = vmatprep.subr.bf16.mxu0 0
    %442 = vmatpush1.bf16.msra.mxu0 %v399
    %443 = vmatprep.subr.bf16.mxu0 0
    %444 = vmatpush1.bf16.msra.mxu0 %v400
    %445 = vmatprep.subr.bf16.mxu0 0
    %446 = vmatpush1.bf16.msra.mxu0 %v401
    %447 = vmatprep.subr.bf16.mxu0 0
    %448 = vmatpush1.bf16.msra.mxu0 %v402
    %449 = vmatprep.subr.bf16.mxu0 0
    %450 = vmatpush1.bf16.msra.mxu0 %v403
    %451 = vmatprep.subr.bf16.mxu0 0
    %452 = vmatpush1.bf16.msra.mxu0 %v404
    %453 = vmatprep.mubr.bf16.mxu0 %v285
    %454 = vmatmul.mubr.bf16.gmra.mrb[0].mxu0 %v284
    %v455 = vpop.f32.mrb[0].mxu0
    %v456 = vadd.f32 %v323, %v455
    %v457 = vpop.f32.mrb[0].mxu0
    %v458 = vpop.f32.mrb[0].mxu0
    %v459 = vadd.f32 %v323, %v458
    %v460 = vpop.f32.mrb[0].mxu0
    %461 = vdwg.mxu0
    %462 = vst [vmem:[#allocation8] sm:$0xff] %v456
    %463 = vst [vmem:[#allocation8 + $0x8] sm:$0xff] %v459
    // Predicated region
    $region42: #{tpu_custom_call.1} parent=1 // pred_check
      _
    $region43: #{tpu_custom_call.1} parent=1 // pred_check_branch
      %465 = sbr.rel (0) target = $region45
    $region44: #{tpu_custom_call.1} parent=1 // pred_region
      %s467 = ssub.s32 256, 256
      %468 = vsyncadd [#allocation4], %s467
      %s469 = sshll.u32 [#allocation8], 4
      %s470 = int_to_ptr.vmem [resolvable:$true] %s469
      %475 = dma.vmem_to_hbm [thread:$0]  %s470, 256, %s7, [#allocation4], 128, 128, 8
    $region45: #{tpu_custom_call.1} parent=1 // pred_fallthru
      _
    // Predicated region
    $region46: #{tpu_custom_call.1} parent=1 // pred_check
      _
    $region47: #{tpu_custom_call.1} parent=1 // pred_check_branch
      %477 = sbr.rel (0) target = $region49
    $region48: #{tpu_custom_call.1} parent=1 // pred_region
      %478 = dma.done [#allocation4], 256
    $region49: #{tpu_custom_call.1} parent=1 // pred_fallthru
      _
    %479 = vsyncpa [#allocation3], 1
    %480 = vsyncpa [#allocation6], 1
    %481 = vsyncpa [#allocation4], 1

</llo_original>
